<compile_context>
chip_gen: v7x
topology: tpu7x:2x2x1
jax: 0.10.0
libtpu: 0.0.40
codegen_flags: <defaults>
</compile_context>

<pallas_src>
import jax
import jax.numpy as jnp
from jax.experimental import pallas as pl
from jax.experimental.pallas import tpu as pltpu


def _conv1x1_kernel(x_ref, w_ref, b_ref, o_ref):
    # x_ref: (1, Cin, M) f32   w_ref: (Cout, Cin) bf16   b_ref: (Cout, 1) f32
    # o_ref: (1, Cout, M) f32
    x = x_ref[0]                                            # (Cin, M) channels->sublanes, spatial->lanes
    y = jnp.dot(w_ref[...], x.astype(jnp.bfloat16),
                preferred_element_type=jnp.float32)         # (Cout, M) MXU, f32 accumulation
    y = y + b_ref[...]                                      # (Cout, 1) broadcasts along lanes
    o_ref[0] = y.astype(o_ref.dtype)                        # full-lane-width store


def _round_up(a, b):
    return ((a + b - 1) // b) * b


def _round_down(a, b):
    return (a // b) * b


def _vmem_capacity_bytes():
    """Per-generation VMEM size; conservative (v7x = 64 MiB) fallback if query fails."""
    try:
        return int(pltpu.get_tpu_info().vmem_capacity_bytes)
    except Exception:
        return 64 * 1024 * 1024


def _pick_spatial_chunk(dhw128, cin, cout, n, vmem_budget):
    """Largest 128-multiple spatial chunk whose double-buffered in+out blocks fit the budget."""
    bytes_per_lane = 2 * 4 * (cin + cout)          # 2 buffers x 4 B x (Cin input + Cout output)
    c = _round_down(max(vmem_budget // bytes_per_lane, 128), 128)
    c = min(c, 32 * 1024)                          # beyond ~32K lanes step overhead is already amortized
    c = min(c, dhw128)
    if n == 1 and dhw128 >= 256:
        # Guarantee >=2 parallel blocks so both v7x TensorCores get work even at batch 1.
        c = min(c, _round_down(dhw128 // 2, 128))
    return max(c, 128)


def decoding_block_up(x, weight, bias):
    """Pallas implementation of decoding_block.forward (upsampling=True branch).

    x:      (N, Cin, D, H, W)  float32 (PyTorch NCDHW)
    weight: (Cout, Cin)        (= Conv3d weight of shape (Cout, Cin, 1, 1, 1) squeezed)
    bias:   (Cout,)
    returns (N, Cout, 2D, 2H, 2W) = Conv3d(kernel_size=1)(Upsample(nearest, x2)(x))
    """
    n, cin, d, h, w = x.shape
    cout = weight.shape[0]
    dhw = d * h * w

    # --- chunk sizing tied to channel count and per-generation VMEM -------------------
    capacity = _vmem_capacity_bytes()
    vmem_budget = min(capacity // 4, 24 * 1024 * 1024)      # block-buffer budget (16 MiB on v7x)
    dhw128 = _round_up(dhw, 128)
    m_chunk = _pick_spatial_chunk(dhw128, cin, cout, n, vmem_budget)

    # Pad the spatial axis so every block is full -> no partial/masked stores, no giant
    # fallback block when dhw has no nice divisor.
    dhw_pad = _round_up(dhw, m_chunk)
    x3 = x.reshape(n, cin, dhw)                              # free reshape of NCDHW
    if dhw_pad != dhw:
        x3 = jnp.pad(x3, ((0, 0), (0, 0), (0, dhw_pad - dhw)))
    grid = (n, dhw_pad // m_chunk)

    # vmem_limit from the real footprint (+ headroom), never below 8 MiB, never near capacity.
    block_bytes = 2 * 4 * (cin + cout) * m_chunk + 4 * cout * (cin + 1)
    vmem_limit = int(min(max(2 * block_bytes + (4 << 20), 8 << 20),
                         min(capacity * 3 // 4, 96 << 20)))

    w_bf16 = weight.astype(jnp.bfloat16)                    # hoisted cast (tiny, once per call)
    b2 = bias.astype(jnp.float32).reshape(cout, 1)

    y = pl.pallas_call(
        _conv1x1_kernel,
        out_shape=jax.ShapeDtypeStruct((n, cout, dhw_pad), x.dtype),
        grid_spec=pltpu.PrefetchScalarGridSpec(
            num_scalar_prefetch=0,
            grid=grid,
            in_specs=[
                pl.BlockSpec((1, cin, m_chunk), lambda i, j: (i, 0, j)),
                pl.BlockSpec((cout, cin), lambda i, j: (0, 0)),
                pl.BlockSpec((cout, 1), lambda i, j: (0, 0)),
            ],
            out_specs=pl.BlockSpec((1, cout, m_chunk), lambda i, j: (i, 0, j)),
        ),
        compiler_params=pltpu.CompilerParams(
            dimension_semantics=("parallel", "parallel"),
            vmem_limit_bytes=vmem_limit,
        ),
    )(x3, w_bf16, b2)

    if dhw_pad != dhw:
        y = y[:, :, :dhw]

    # Nearest x2 upsample (conv already applied): one contiguous broadcast pass that writes
    # the final NCDHW layout directly — no transposes.  (Fused strided-store path for large
    # W is left as the TODO above.)
    y = y.reshape(n, cout, d, h, w)
    up = jnp.broadcast_to(
        y[:, :, :, None, :, None, :, None],
        (n, cout, d, 2, h, 2, w, 2),
    )
    return up.reshape(n, cout, 2 * d, 2 * h, 2 * w)


def reference(x, weight, bias):
    """Plain-JAX reference of Upsample(nearest, x2) -> Conv3d(kernel_size=1)."""
    xu = jnp.repeat(jnp.repeat(jnp.repeat(x, 2, axis=2), 2, axis=3), 2, axis=4)
    y = jnp.einsum("ncdhw,oc->nodhw", xu, weight)
    return y + bias[None, :, None, None, None]


if __name__ == "__main__":
    key = jax.random.PRNGKey(0)
    k1, k2, k3 = jax.random.split(key, 3)

    # decoding_block(in_size=8, out_size=4); input (N, Cin, D, H, W)
    N, Cin, Cout, D, H, W = 2, 8, 4, 8, 8, 8
    x = jax.random.normal(k1, (N, Cin, D, H, W), jnp.float32)
    weight = jax.random.normal(k2, (Cout, Cin), jnp.float32) / jnp.sqrt(Cin)
    bias = 0.1 * jax.random.normal(k3, (Cout,), jnp.float32)

    # quantize inputs/params to bf16-exact values so the bf16 MXU dot and the f32 XLA
    # reference agree closely (kernel accumulates in f32)
    x = x.astype(jnp.bfloat16).astype(jnp.float32)
    weight = weight.astype(jnp.bfloat16).astype(jnp.float32)
    bias = bias.astype(jnp.bfloat16).astype(jnp.float32)

    out = decoding_block_up(x, weight, bias)
    out = jax.block_until_ready(out)

    ref = reference(x, weight, bias)
    assert out.shape == (N, Cout, 2 * D, 2 * H, 2 * W), out.shape
    assert jnp.allclose(out, ref, atol=1e-4, rtol=1e-4), float(jnp.max(jnp.abs(out - ref)))
    print("KERNEL_OK")
</pallas_src>

<mosaic_0001>
module attributes {stable_mosaic.version = 11 : i64} {
  func.func @_conv1x1_kernel(%arg0: i32, %arg1: i32, %arg2: memref<1x8x512xf32, #tpu.memory_space<vmem>>, %arg3: memref<4x8xbf16, #tpu.memory_space<vmem>>, %arg4: memref<4x1xf32, #tpu.memory_space<vmem>>, %arg5: memref<1x4x512xf32, #tpu.memory_space<vmem>>) attributes {dimension_semantics = [#tpu.dimension_semantics<parallel>, #tpu.dimension_semantics<parallel>], iteration_bounds = array<i64: 2, 1>, scalar_prefetch = 0 : i64, scratch_operands = 0 : i64, tpu.core_type = #tpu.core_type<tc>, window_params = [{transform_indices = @transform_0, window_bounds = array<i64: 1, 8, 512>}, {pipeline_mode = #tpu.pipeline_mode<synchronous>, transform_indices = @transform_1, window_bounds = array<i64: 4, 8>}, {pipeline_mode = #tpu.pipeline_mode<synchronous>, transform_indices = @transform_2, window_bounds = array<i64: 4, 1>}, {transform_indices = @transform_3, window_bounds = array<i64: 1, 4, 512>}]} {
    %c0 = arith.constant 0 : index
    %c0_0 = arith.constant 0 : index
    %c0_1 = arith.constant 0 : index
    %0 = vector.load %arg2[%c0, %c0_0, %c0_1] : memref<1x8x512xf32, #tpu.memory_space<vmem>>, vector<1x8x512xf32>
    %1 = vector.shape_cast %0 : vector<1x8x512xf32> to vector<8x512xf32>
    %c0_2 = arith.constant 0 : index
    %c0_3 = arith.constant 0 : index
    %2 = vector.load %arg3[%c0_2, %c0_3] : memref<4x8xbf16, #tpu.memory_space<vmem>>, vector<4x8xbf16>
    %3 = arith.truncf %1 : vector<8x512xf32> to vector<8x512xbf16>
    %cst = arith.constant dense<0.000000e+00> : vector<4x512xf32>
    %4 = tpu.matmul %2, %3, %cst {dimension_numbers = #tpu.dot_dimension_numbers<[1], [0], [0], [1], [0, 0, 1, 1], [], []>} : vector<4x8xbf16>, vector<8x512xbf16>, vector<4x512xf32> -> vector<4x512xf32>
    %c0_4 = arith.constant 0 : index
    %c0_5 = arith.constant 0 : index
    %5 = vector.load %arg4[%c0_4, %c0_5] : memref<4x1xf32, #tpu.memory_space<vmem>>, vector<4x1xf32>
    %6 = vector.broadcast %5 : vector<4x1xf32> to vector<4x512xf32>
    %7 = arith.addf %4, %6 : vector<4x512xf32>
    %c0_6 = arith.constant 0 : index
    %c0_7 = arith.constant 0 : index
    %c0_8 = arith.constant 0 : index
    %8 = vector.load %arg5[%c0_6, %c0_7, %c0_8] : memref<1x4x512xf32, #tpu.memory_space<vmem>>, vector<1x4x512xf32>
    %9 = vector.shape_cast %8 : vector<1x4x512xf32> to vector<4x512xf32>
    %10 = vector.shape_cast %7 : vector<4x512xf32> to vector<1x4x512xf32>
    tpu.vector_store %arg5[%c0_6, %c0_7, %c0_8], %10 {strides = array<i32>} : memref<1x4x512xf32, #tpu.memory_space<vmem>>, vector<1x4x512xf32>,
    return
  }
  func.func @transform_0(%arg0: i32, %arg1: i32) -> (i32, i32, i32) {
    %c0_i32 = arith.constant 0 : i32
    %c0_i32_0 = arith.constant 0 : i32
    return %arg0, %c0_i32, %arg1 : i32, i32, i32
  }
  func.func @transform_1(%arg0: i32, %arg1: i32) -> (i32, i32) {
    %c0_i32 = arith.constant 0 : i32
    %c0_i32_0 = arith.constant 0 : i32
    %c0_i32_1 = arith.constant 0 : i32
    return %c0_i32, %c0_i32_0 : i32, i32
  }
  func.func @transform_2(%arg0: i32, %arg1: i32) -> (i32, i32) {
    %c0_i32 = arith.constant 0 : i32
    %c0_i32_0 = arith.constant 0 : i32
    %c0_i32_1 = arith.constant 0 : i32
    return %c0_i32, %c0_i32_0 : i32, i32
  }
  func.func @transform_3(%arg0: i32, %arg1: i32) -> (i32, i32, i32) {
    %c0_i32 = arith.constant 0 : i32
    %c0_i32_0 = arith.constant 0 : i32
    return %arg0, %c0_i32, %arg1 : i32, i32, i32
  }
}

</mosaic_0001>

<llo_original>
// kernel: tpu_custom_call.1
$region0: #{tpu_custom_call.1}
  #allocation0 [shape = 'u32[]', space=smem, size = 0x4, offset = 0x4, fixed_abs, tag = 'smem constant byte address 0x4 - core index']
  #allocation1 [shape = 'u32[144,128]{1,0:T(1,128)}', space=vmem, size = 0x12000, scoped, tag = 'internal scratch']
  %s0 = inlined_call_operand.hbm [shape: f32[2,8,512], index: 0, kind: input, shape index: {}]
  %s1 = inlined_call_operand.vmem [shape: bf16[4,8], index: 1, kind: input, shape index: {}]
  %s2 = inlined_call_operand.vmem [shape: f32[4,1], index: 2, kind: input, shape index: {}]
  %s3 = inlined_call_operand.hbm [shape: f32[2,4,512], index: 3, kind: output, shape index: {}]
  %s4 = sld [smem:[#allocation0]]
  $region49: #{tpu_custom_call.1} parent=0
    _
  %s6 = ssub.s32 1, %s4
  %s7 = scalar_select 0, %s6, %s4
  $region1: #{tpu_custom_call.1} parent=0
    #allocation2 [shape = 'u8[32768]{0}', space=vmem, size = 0x8000, scoped, tag = 'input window, operand 0']
    #allocation3 [shape = 's32[2]{0}', space=sflag, size = 0x8, scoped, tag = 'scoped memory for tpu_custom_call.1']
    #allocation4 [shape = 's32[2]{0}', space=sflag, size = 0x8, scoped, tag = 'scoped memory for tpu_custom_call.1']
    #allocation5 [shape = 'u8[16384]{0}', space=vmem, size = 0x4000, scoped, tag = 'output window, operand 0']
    %8 = vsyncpa [#allocation3], 0
    %s9 = scalar_lea.sflag [#allocation3], 1
    %10 = vsyncpa %s9, 0
    %11 = vsyncpa [#allocation4], 0
    %s12 = scalar_lea.sflag [#allocation4], 1
    %13 = vsyncpa %s12, 0
    loop: start=0, step=1, limit=4
    $region2: #{tpu_custom_call.1} parent=1 // loop_pre_header
      _
    $region3: #{tpu_custom_call.1} parent=1 // loop_header
      %s15 = sphi 0, %s19
      %p16 = scmp.ge.s32.totalorder %s15, 4
      %s22 = sphi 0, %s34
      %s23 = sphi 0, %s30
      %s24 = sphi 0, %s22
      %s25 = sphi 0, %s23
      %s26 = sphi 0, %s24
      %s27 = sphi 0, %s25
      %s39 = sphi 0, %s41
      %s42 = sphi 0, %s39
      %s43 = sphi 0, %s42
      %s59 = sphi 0, %s43
      %s63 = sphi 0, %s63
      %s65 = sphi 0, %s63
      %s66 = sphi 0, %s65
      %s80 = sphi 0, %s66
      %s84 = sphi 0, %s84
      %s86 = sphi 0, %s84
      %s87 = sphi 0, %s86
      %s101 = sphi 0, %s87
      %s109 = sphi 0, %s111
      %s112 = sphi 0, %s109
      %s113 = sphi 0, %s112
      %s129 = sphi 0, %s113
    $region4: #{tpu_custom_call.1} parent=1 // loop_header_branch
      %18 = sbr.rel (%p16) target = $region8
    $region5: #{tpu_custom_call.1} parent=1 // loop_body
      %s20 = ssub.s32 %s15, 1
      %s21 = ssub.s32 %s15, 2
      %s28 = sadd.s32 1, %s23
      %p29 = scmp.ge.s32.totalorder %s28, 1
      %s30 = scalar_select %p29, 0, %s28
      %s31 = sadd.s32 1, %s22
      %s32 = scalar_select %p29, %s31, %s22
      %p33 = scmp.ge.s32.totalorder %s32, 2
      %s34 = scalar_select %p33, 0, %s32
      %s35 = ssub.s32 %s22, %s34
      %s36 = ssub.s32 %s23, %s30
      %s37 = sor.u32 %s35, %s36
      %p38 = scmp.eq.s32.totalorder %s37, 0
      %s40 = sadd.s32 %s39, 1
      %s41 = scalar_select %p38, %s39, %s40
      %p44 = pneg %p38
      %p45 = scmp.eq.s32.totalorder %s15, 1
      %p46 = por %p44, %p45
      %p47 = scmp.ne.s32.totalorder %s39, %s42
      %p48 = scmp.eq.s32.totalorder %s15, 0
      %p49 = por %p47, %p48
      %p50 = scmp.ne.s32.totalorder %s39, %s42
      %p51 = scmp.eq.s32.totalorder %s20, 1
      %p52 = por %p50, %p51
      %p53 = scmp.ne.s32.totalorder %s42, %s43
      %p54 = scmp.eq.s32.totalorder %s20, 0
      %p55 = por %p53, %p54
      %p56 = scmp.ne.s32.totalorder %s42, %s43
      %p57 = scmp.eq.s32.totalorder %s21, 1
      %p58 = por %p56, %p57
      %p60 = scmp.ne.s32.totalorder %s43, %s59
      %p61 = scmp.eq.s32.totalorder %s21, 0
      %p62 = por %p60, %p61
      %s64 = sadd.s32 %s63, 1
      %p67 = scmp.eq.s32.totalorder %s15, 1
      %p68 = scmp.ne.s32.totalorder %s63, %s65
      %p69 = scmp.eq.s32.totalorder %s15, 0
      %p70 = por %p68, %p69
      %p71 = scmp.ne.s32.totalorder %s63, %s65
      %p72 = scmp.eq.s32.totalorder %s20, 1
      %p73 = por %p71, %p72
      %p74 = scmp.ne.s32.totalorder %s65, %s66
      %p75 = scmp.eq.s32.totalorder %s20, 0
      %p76 = por %p74, %p75
      %p77 = scmp.ne.s32.totalorder %s65, %s66
      %p78 = scmp.eq.s32.totalorder %s21, 1
      %p79 = por %p77, %p78
      %p81 = scmp.ne.s32.totalorder %s66, %s80
      %p82 = scmp.eq.s32.totalorder %s21, 0
      %p83 = por %p81, %p82
      %s85 = sadd.s32 %s84, 1
      %p88 = scmp.eq.s32.totalorder %s15, 1
      %p89 = scmp.ne.s32.totalorder %s84, %s86
      %p90 = scmp.eq.s32.totalorder %s15, 0
      %p91 = por %p89, %p90
      %p92 = scmp.ne.s32.totalorder %s84, %s86
      %p93 = scmp.eq.s32.totalorder %s20, 1
      %p94 = por %p92, %p93
      %p95 = scmp.ne.s32.totalorder %s86, %s87
      %p96 = scmp.eq.s32.totalorder %s20, 0
      %p97 = por %p95, %p96
      %p98 = scmp.ne.s32.totalorder %s86, %s87
      %p99 = scmp.eq.s32.totalorder %s21, 1
      %p100 = por %p98, %p99
      %p102 = scmp.ne.s32.totalorder %s87, %s101
      %p103 = scmp.eq.s32.totalorder %s21, 0
      %p104 = por %p102, %p103
      %s105 = ssub.s32 %s22, %s34
      %s106 = ssub.s32 %s23, %s30
      %s107 = sor.u32 %s105, %s106
      %p108 = scmp.eq.s32.totalorder %s107, 0
      %s110 = sadd.s32 %s109, 1
      %s111 = scalar_select %p108, %s109, %s110
      %p114 = pneg %p108
      %p115 = scmp.eq.s32.totalorder %s15, 1
      %p116 = por %p114, %p115
      %p117 = scmp.ne.s32.totalorder %s109, %s112
      %p118 = scmp.eq.s32.totalorder %s15, 0
      %p119 = por %p117, %p118
      %p120 = scmp.ne.s32.totalorder %s109, %s112
      %p121 = scmp.eq.s32.totalorder %s20, 1
      %p122 = por %p120, %p121
      %p123 = scmp.ne.s32.totalorder %s112, %s113
      %p124 = scmp.eq.s32.totalorder %s20, 0
      %p125 = por %p123, %p124
      %p126 = scmp.ne.s32.totalorder %s112, %s113
      %p127 = scmp.eq.s32.totalorder %s21, 1
      %p128 = por %p126, %p127
      %p130 = scmp.ne.s32.totalorder %s113, %s129
      %p131 = scmp.eq.s32.totalorder %s21, 0
      %p132 = por %p130, %p131
      %p133 = scmp.le.s32.totalorder 1, %s15
      %p134 = scmp.lt.s32.totalorder %s15, 3
      %p135 = pnand %p133, %p134
      %p136 = pneg %p135
      // Predicated region
      $region9: #{tpu_custom_call.1} parent=5 // pred_check
        _
      $region10: #{tpu_custom_call.1} parent=5 // pred_check_branch
        %138 = sbr.rel (%p135) target = $region12
      $region11: #{tpu_custom_call.1} parent=5 // pred_region
        %s139 = ssub.s32 %s15, 1
        // Predicated region
        $region13: #{tpu_custom_call.1} parent=11 // pred_check
          %p140 = pneg %p76
        $region14: #{tpu_custom_call.1} parent=11 // pred_check_branch
          %142 = sbr.rel (%p140) target = $region16
        $region15: #{tpu_custom_call.1} parent=11 // pred_region
          _
        $region16: #{tpu_custom_call.1} parent=11 // pred_fallthru
          _
        // Predicated region
        $region17: #{tpu_custom_call.1} parent=11 // pred_check
          %p143 = pneg %p97
        $region18: #{tpu_custom_call.1} parent=11 // pred_check_branch
          %145 = sbr.rel (%p143) target = $region20
        $region19: #{tpu_custom_call.1} parent=11 // pred_region
          _
        $region20: #{tpu_custom_call.1} parent=11 // pred_fallthru
          _
      $region12: #{tpu_custom_call.1} parent=5 // pred_fallthru
        _
      %p146 = scmp.lt.s32.totalorder %s15, 2
      // Predicated region
      $region21: #{tpu_custom_call.1} parent=5 // pred_check
        %p147 = pneg %p146
      $region22: #{tpu_custom_call.1} parent=5 // pred_check_branch
        %149 = sbr.rel (%p147) target = $region24
      $region23: #{tpu_custom_call.1} parent=5 // pred_region
        // Predicated region
        $region25: #{tpu_custom_call.1} parent=23 // pred_check
          %p150 = pneg %p49
        $region26: #{tpu_custom_call.1} parent=23 // pred_check_branch
          %152 = sbr.rel (%p150) target = $region28
        $region27: #{tpu_custom_call.1} parent=23 // pred_region
          %s153 = sand.u32 %s39, 1
          %s154 = scalar_lea.sflag [#allocation3], %s153
          %s155 = sand.u32 %s39, 1
          %s156 = smul.addr %s155, 32
          %s157 = scalar_lea.vmem [#allocation2], %s156
          %s158 = smul.u32 4, %s23
          %s160 = ssub.s32 512, 512
          %161 = vsyncadd %s154, %s160
          %s162 = smul.addr %s22, 4
          %s163 = sadd.s32 %s158, %s162
          %s164 = smul.addr %s163, 128
          %s165 = scalar_lea.hbm %s0, %s164
          %s167 = sshll.u32 %s157, 4
          %s168 = int_to_ptr.vmem [resolvable:$true] %s167
          %170 = dma.hbm_to_vmem [thread:$0]  %s165, 512, %s168, %s154
        $region28: #{tpu_custom_call.1} parent=23 // pred_fallthru
          _
      $region24: #{tpu_custom_call.1} parent=5 // pred_fallthru
        _
      %p171 = scmp.le.s32.totalorder 1, %s15
      %p172 = scmp.lt.s32.totalorder %s15, 3
      %p173 = pnand %p171, %p172
      %p174 = pneg %p173
      // Predicated region
      $region29: #{tpu_custom_call.1} parent=5 // pred_check
        _
      $region30: #{tpu_custom_call.1} parent=5 // pred_check_branch
        %176 = sbr.rel (%p173) target = $region32
      $region31: #{tpu_custom_call.1} parent=5 // pred_region
        %s177 = ssub.s32 %s15, 1
        %s178 = sand.u32 %s42, 1
        %s179 = scalar_lea.sflag [#allocation3], %s178
        %s180 = sand.u32 %s42, 1
        %s181 = smul.addr %s180, 32
        %s182 = scalar_lea.vmem [#allocation2], %s181
        // Predicated region
        $region33: #{tpu_custom_call.1} parent=31 // pred_check
          %p183 = pneg %p55
        $region34: #{tpu_custom_call.1} parent=31 // pred_check_branch
          %185 = sbr.rel (%p183) target = $region36
        $region35: #{tpu_custom_call.1} parent=31 // pred_region
          %186 = dma.done %s179, 512
        $region36: #{tpu_custom_call.1} parent=31 // pred_fallthru
          _
        %s187 = sand.u32 %s42, 1
        %s188 = scalar_lea.sflag [#allocation3], %s187
        %s189 = sand.u32 %s42, 1
        %s190 = smul.addr %s189, 32
        %s191 = scalar_lea.vmem [#allocation2], %s190
        %p192 = pneg %p55
        %p193 = pneg %p52
        %p194 = pneg %p76
        %p195 = pneg %p73
        %p196 = pneg %p97
        %p197 = pneg %p94
        %p198 = pneg %p125
        %p199 = pneg %p122
        %s200 = sand.u32 %s112, 1
        %s201 = scalar_lea.sflag [#allocation4], %s200
        %s202 = sand.u32 %s112, 1
        %s203 = smul.addr %s202, 16
        %s204 = scalar_lea.vmem [#allocation5], %s203
        %s205 = smul.u32 4, %s25
        %s206 = smul.u32 4, %s25
        %v208 = vld [vmem:[%s182] sm:$0xff]
        %v209 = vld [vmem:[%s182 + $0x8] sm:$0xff]
        %v210 = vld [vmem:[%s182 + $0x10] sm:$0xff]
        %v211 = vld [vmem:[%s182 + $0x18] sm:$0xff]
        %v212 = vld [vmem:[%s1] sm:$0x3]
        %v213 = vpack.c.bf16 %v208, %v208
        %v214 = vpack.c.bf16 %v209, %v209
        %v215 = vpack.c.bf16 %v210, %v210
        %v216 = vpack.c.bf16 %v211, %v211
        %v217 = vld [vmem:[%s2] sm:$0xf]
        %219 = vset.pattern.permute.xlu0 0
        %220 = vperm.xlu0 %219, %v217
        %v221 = vpop.permute.xlu0 %220
        %vm223 = vcmask 64512
        %v225 = vsel %vm223, %v212, 0
        %vm227 = vcmask 1043456
        %v229 = vsel %vm227, %v213, 0
        %v232 = vsel %vm227, %v214, 0
        %v235 = vsel %vm227, %v215, 0
        %v238 = vsel %vm227, %v216, 0
        %240 = vmatprep.subr.bf16.mxu0 %v232
        %241 = vmatpush1.bf16.msra.mxu0 %v229
        %242 = vmatprep.subr.bf16.mxu0 0
        %243 = vmatpush1.bf16.msra.mxu0 0
        %244 = vmatprep.subr.bf16.mxu0 0
        %245 = vmatpush1.bf16.msra.mxu0 0
        %246 = vmatprep.subr.bf16.mxu0 0
        %247 = vmatpush1.bf16.msra.mxu0 0
        %248 = vmatprep.subr.bf16.mxu0 0
        %249 = vmatpush1.bf16.msra.mxu0 0
        %250 = vmatprep.subr.bf16.mxu0 0
        %251 = vmatpush1.bf16.msra.mxu0 0
        %252 = vmatprep.subr.bf16.mxu0 0
        %253 = vmatpush1.bf16.msra.mxu0 0
        %254 = vmatprep.subr.bf16.mxu0 0
        %255 = vmatpush1.bf16.msra.mxu0 0
        %256 = vmatprep.subr.bf16.mxu0 0
        %257 = vmatpush1.bf16.msra.mxu0 0
        %258 = vmatprep.subr.bf16.mxu0 0
        %259 = vmatpush1.bf16.msra.mxu0 0
        %260 = vmatprep.subr.bf16.mxu0 0
        %261 = vmatpush1.bf16.msra.mxu0 0
        %262 = vmatprep.subr.bf16.mxu0 0
        %263 = vmatpush1.bf16.msra.mxu0 0
        %264 = vmatprep.subr.bf16.mxu0 0
        %265 = vmatpush1.bf16.msra.mxu0 0
        %266 = vmatprep.subr.bf16.mxu0 0
        %267 = vmatpush1.bf16.msra.mxu0 0
        %268 = vmatprep.subr.bf16.mxu0 0
        %269 = vmatpush1.bf16.msra.mxu0 0
        %270 = vmatprep.subr.bf16.mxu0 0
        %271 = vmatpush1.bf16.msra.mxu0 0
        %272 = vmatprep.mubr.bf16.mxu0 0
        %273 = vmatmul.mubr.bf16.gmra.mrb[0].mxu0 %v225
        %v274 = vpop.f32.mrb[0].mxu0
        %v275 = vadd.f32 %v221, %v274
        %v276 = vpop.f32.mrb[0].mxu0
        %v277 = vadd.f32 %v221, %v276
        %v278 = vpop.f32.mrb[0].mxu0
        %v279 = vpop.f32.mrb[0].mxu0
        %280 = vdwg.mxu0
        %281 = vmatprep.subr.bf16.mxu0 %v238
        %282 = vmatpush1.bf16.msra.mxu0 %v235
        %283 = vmatprep.subr.bf16.mxu0 0
        %284 = vmatpush1.bf16.msra.mxu0 0
        %285 = vmatprep.subr.bf16.mxu0 0
        %286 = vmatpush1.bf16.msra.mxu0 0
        %287 = vmatprep.subr.bf16.mxu0 0
        %288 = vmatpush1.bf16.msra.mxu0 0
        %289 = vmatprep.subr.bf16.mxu0 0
        %290 = vmatpush1.bf16.msra.mxu0 0
        %291 = vmatprep.subr.bf16.mxu0 0
        %292 = vmatpush1.bf16.msra.mxu0 0
        %293 = vmatprep.subr.bf16.mxu0 0
        %294 = vmatpush1.bf16.msra.mxu0 0
        %295 = vmatprep.subr.bf16.mxu0 0
        %296 = vmatpush1.bf16.msra.mxu0 0
        %297 = vmatprep.subr.bf16.mxu0 0
        %298 = vmatpush1.bf16.msra.mxu0 0
        %299 = vmatprep.subr.bf16.mxu0 0
        %300 = vmatpush1.bf16.msra.mxu0 0
        %301 = vmatprep.subr.bf16.mxu0 0
        %302 = vmatpush1.bf16.msra.mxu0 0
        %303 = vmatprep.subr.bf16.mxu0 0
        %304 = vmatpush1.bf16.msra.mxu0 0
        %305 = vmatprep.subr.bf16.mxu0 0
        %306 = vmatpush1.bf16.msra.mxu0 0
        %307 = vmatprep.subr.bf16.mxu0 0
        %308 = vmatpush1.bf16.msra.mxu0 0
        %309 = vmatprep.subr.bf16.mxu0 0
        %310 = vmatpush1.bf16.msra.mxu0 0
        %311 = vmatprep.subr.bf16.mxu0 0
        %312 = vmatpush1.bf16.msra.mxu0 0
        %313 = vmatprep.mubr.bf16.mxu0 0
        %314 = vmatmul.mubr.bf16.gmra.mrb[0].mxu0 %v225
        %v315 = vpop.f32.mrb[0].mxu0
        %v316 = vadd.f32 %v221, %v315
        %v317 = vpop.f32.mrb[0].mxu0
        %v318 = vadd.f32 %v221, %v317
        %v319 = vpop.f32.mrb[0].mxu0
        %v320 = vpop.f32.mrb[0].mxu0
        %321 = vdwg.mxu0
        %v326 = vcombine.low %v275, %v277
        %v327 = vcombine.low %v316, %v318
        %330 = vst [vmem:[%s204] sm:$0xff] %v326
        %331 = vst [vmem:[%s204 + $0x8] sm:$0xff] %v327
        %s332 = sand.u32 %s112, 1
        %s333 = scalar_lea.sflag [#allocation4], %s332
        %s334 = sand.u32 %s112, 1
        %s335 = smul.addr %s334, 16
        %s336 = scalar_lea.vmem [#allocation5], %s335
        // Predicated region
        $region37: #{tpu_custom_call.1} parent=31 // pred_check
          %p337 = pneg %p122
        $region38: #{tpu_custom_call.1} parent=31 // pred_check_branch
          %339 = sbr.rel (%p337) target = $region40
        $region39: #{tpu_custom_call.1} parent=31 // pred_region
          %s340 = smul.u32 4, %s25
          %s342 = ssub.s32 256, 256
          %343 = vsyncadd %s333, %s342
          %s344 = smul.addr %s24, 4
          %s345 = sadd.s32 %s340, %s344
          %s346 = smul.addr %s345, 64
          %s347 = scalar_lea.hbm %s3, %s346
          %s349 = sshll.u32 %s336, 4
          %s350 = int_to_ptr.vmem [resolvable:$true] %s349
          %352 = dma.vmem_to_hbm [thread:$0]  %s350, 256, %s347, %s333
        $region40: #{tpu_custom_call.1} parent=31 // pred_fallthru
          _
      $region32: #{tpu_custom_call.1} parent=5 // pred_fallthru
        _
      %p353 = scmp.le.s32.totalorder 2, %s15
      // Predicated region
      $region41: #{tpu_custom_call.1} parent=5 // pred_check
        %p354 = pneg %p353
      $region42: #{tpu_custom_call.1} parent=5 // pred_check_branch
        %356 = sbr.rel (%p354) target = $region44
      $region43: #{tpu_custom_call.1} parent=5 // pred_region
        %s357 = ssub.s32 %s15, 2
        // Predicated region
        $region45: #{tpu_custom_call.1} parent=43 // pred_check
          %p358 = pneg %p128
        $region46: #{tpu_custom_call.1} parent=43 // pred_check_branch
          %360 = sbr.rel (%p358) target = $region48
        $region47: #{tpu_custom_call.1} parent=43 // pred_region
          %s361 = sand.u32 %s113, 1
          %s362 = scalar_lea.sflag [#allocation4], %s361
          %s363 = sand.u32 %s113, 1
          %s364 = smul.addr %s363, 16
          %s365 = scalar_lea.vmem [#allocation5], %s364
          %366 = dma.done %s362, 256
        $region48: #{tpu_custom_call.1} parent=43 // pred_fallthru
          _
      $region44: #{tpu_custom_call.1} parent=5 // pred_fallthru
        _
    $region6: #{tpu_custom_call.1} parent=1 // loop_footer
      %s19 = sadd.s32 1, %s15
    $region7: #{tpu_custom_call.1} parent=1 // loop_footer_branch
      %14 = sbr.rel target = $region3
    $region8: #{tpu_custom_call.1} parent=1 // loop_exit
      _
    %367 = vsyncpa [#allocation3], 1
    %s368 = scalar_lea.sflag [#allocation3], 1
    %369 = vsyncpa %s368, 1
    %370 = vsyncpa [#allocation4], 1
    %s371 = scalar_lea.sflag [#allocation4], 1
    %372 = vsyncpa %s371, 1

</llo_original>
